<compile_context>
chip_gen: v6e
topology: v6e:2x2x1
jax: 0.10.0
libtpu: 0.0.40
codegen_flags: <defaults>
</compile_context>

<pallas_src>
import math
import functools

import numpy as np
import jax
import jax.numpy as jnp
from jax.experimental import pallas as pl
from jax.experimental.pallas import tpu as pltpu


def _level_params(H, level):
    """kernel/stride/padding/out_len exactly as the PyTorch module computes."""
    k = math.ceil(H / level)
    s = k
    p = math.floor((k * level - H + 1) / 2)
    out_len = (H + 2 * p - k) // s + 1          # ceil_mode=False
    return k, s, p, out_len


# ----------------------------- kernels --------------------------------------

def _spp_max_kernel(x_ref, o_ref, *, windows):
    # x_ref block: (H, col_tile); o_ref block: (TOTAL_BINS, col_tile)
    x = x_ref[...]
    H = x.shape[0]
    hidx = jax.lax.broadcasted_iota(jnp.int32, (H, 1), 0)
    neg = jnp.asarray(-jnp.inf, dtype=x.dtype)
    for row, (lo, hi) in enumerate(windows):
        if lo == 0 and hi == H:
            col = jnp.max(x, axis=0, keepdims=True)
        else:
            # max_pool1d pads with -inf, so masking to the valid window
            # [lo, hi) is exactly equivalent (sublane reduce, lane-dense).
            mask = (hidx >= lo) & (hidx < hi)
            col = jnp.max(jnp.where(mask, x, neg), axis=0, keepdims=True)
        o_ref[row:row + 1, :] = col              # direct static row write


def _spp_avg_kernel(p_ref, x_ref, o_ref):
    # p_ref: (TOTAL_BINS, H) f32 pooling matrix; x_ref: (H, col_tile)
    x = x_ref[...].astype(jnp.float32)
    o_ref[...] = jnp.dot(p_ref[...], x,
                         preferred_element_type=jnp.float32).astype(o_ref.dtype)


# ----------------------------- wrapper ---------------------------------------

def _pick_col_tile(NC, H, itemsize, override=None):
    if override is not None:
        return override
    if NC <= 128:
        return NC                                # full extent (small case)
    # ~8 MiB for the double-buffered input block; lane tile multiple of 128,
    # capped so large problems still expose >=2 parallel grid units.
    budget = 8 * 1024 * 1024
    ct = budget // (2 * H * itemsize)
    ct = max(128, min(ct, NC, 2048))
    return (ct // 128) * 128


def spp_layer(x, num_levels, pool_type='max_pool', *, col_tile=None):
    N, C, H = x.shape
    levels = [_level_params(H, i + 1) for i in range(num_levels)]
    lens = [lp[3] for lp in levels]
    total = sum(lens)
    NC = N * C

    # (N, C, H) -> (H, N*C): pooled axis on sublanes, rows on lanes.
    x2d = jnp.transpose(x, (2, 0, 1)).reshape(H, NC)
    itemsize = jnp.dtype(x2d.dtype).itemsize
    ct = _pick_col_tile(NC, H, itemsize, col_tile)
    grid = (pl.cdiv(NC, ct),)

    cparams = pltpu.CompilerParams(
        dimension_semantics=("parallel",),
        vmem_limit_bytes=32 * 1024 * 1024)

    # Static clamped windows per bin (shared by both pool types).
    windows = []
    for (k, s, p, out_len) in levels:
        for b in range(out_len):
            lo = max(0, b * s - p)
            hi = min(H, b * s - p + k)
            assert lo < hi, "pooling window does not intersect the input"
            windows.append((lo, hi, k))

    if pool_type == 'max_pool':
        kernel = functools.partial(
            _spp_max_kernel, windows=tuple((lo, hi) for lo, hi, _ in windows))
        pooled = pl.pallas_call(
            kernel,
            out_shape=jax.ShapeDtypeStruct((total, NC), x2d.dtype),
            grid=grid,
            in_specs=[pl.BlockSpec((H, ct), lambda j: (0, j))],
            out_specs=pl.BlockSpec((total, ct), lambda j: (0, j)),
            compiler_params=cparams,
        )(x2d)
    else:
        # Pooling matrix: 1/k inside each valid window (avg_pool1d default
        # count_include_pad=True -> zero pads add nothing, divisor is full k).
        P = np.zeros((total, H), dtype=np.float32)
        for row, (lo, hi, k) in enumerate(windows):
            P[row, lo:hi] = 1.0 / k
        pooled = pl.pallas_call(
            _spp_avg_kernel,
            out_shape=jax.ShapeDtypeStruct((total, NC), x2d.dtype),
            grid=grid,
            in_specs=[pl.BlockSpec((total, H), lambda j: (0, 0)),
                      pl.BlockSpec((H, ct), lambda j: (0, j))],
            out_specs=pl.BlockSpec((total, ct), lambda j: (0, j)),
            compiler_params=cparams,
        )(jnp.asarray(P), x2d)

    # Reassemble PyTorch ordering: per level (N, C, L).view(N, C*L), cat dim 1.
    pooled = pooled.reshape(total, N, C)
    pieces, off = [], 0
    for L in lens:
        lvl = pooled[off:off + L]                        # (L, N, C)
        pieces.append(jnp.transpose(lvl, (1, 2, 0)).reshape(N, C * L))
        off += L
    return jnp.concatenate(pieces, axis=1)


# ----------------------------- reference -------------------------------------

def _spp_reference(x, num_levels, pool_type='max_pool'):
    """Plain-JAX reference reproducing F.max_pool1d/avg_pool1d semantics."""
    N, C, H = x.shape
    x = x.astype(jnp.float32)
    pieces = []
    for i in range(num_levels):
        level = i + 1
        k, s, p, out_len = _level_params(H, level)
        bins = []
        for b in range(out_len):
            lo = max(0, b * s - p)
            hi = min(H, b * s - p + k)
            seg = x[:, :, lo:hi]
            if pool_type == 'max_pool':
                bins.append(jnp.max(seg, axis=-1, keepdims=True))
            else:
                bins.append(jnp.sum(seg, axis=-1, keepdims=True) / float(k))
        lvl = jnp.concatenate(bins, axis=-1)             # (N, C, out_len)
        pieces.append(lvl.reshape(N, -1))
    return jnp.concatenate(pieces, axis=1)


if __name__ == "__main__":
    num_levels = 3

    # Small shape matching the module's (N, C, H) input convention.
    N, C, H = 2, 4, 16
    x = jax.random.normal(jax.random.PRNGKey(0), (N, C, H), dtype=jnp.float32)

    out_max = jax.block_until_ready(spp_layer(x, num_levels, 'max_pool'))
    out_avg = jax.block_until_ready(spp_layer(x, num_levels, 'avg_pool'))
    ref_max = _spp_reference(x, num_levels, 'max_pool')
    ref_avg = _spp_reference(x, num_levels, 'avg_pool')
    total_bins = sum(i + 1 for i in range(num_levels))
    assert out_max.shape == (N, C * total_bins)
    assert jnp.allclose(out_max, ref_max, atol=1e-5, rtol=1e-5)
    assert jnp.allclose(out_avg, ref_avg, atol=1e-5, rtol=1e-5)

    # Exercise the lane-tiled / ragged-last-tile path (N*C > 128, 128-lane tiles).
    N2, C2, H2 = 3, 100, 40
    x2 = jax.random.normal(jax.random.PRNGKey(0), (N2, C2, H2), dtype=jnp.float32)
    out2 = jax.block_until_ready(
        spp_layer(x2, num_levels, 'max_pool', col_tile=128))
    ref2 = _spp_reference(x2, num_levels, 'max_pool')
    assert jnp.allclose(out2, ref2, atol=1e-5, rtol=1e-5)

    print("KERNEL_OK")
</pallas_src>

<mosaic_0001>
module attributes {stable_mosaic.version = 11 : i64} {
  func.func @_spp_max_kernel(%arg0: i32, %arg1: memref<16x8xf32, #tpu.memory_space<vmem>>, %arg2: memref<6x8xf32, #tpu.memory_space<vmem>>) attributes {dimension_semantics = [#tpu.dimension_semantics<parallel>], iteration_bounds = array<i64: 1>, scalar_prefetch = 0 : i64, scratch_operands = 0 : i64, tpu.core_type = #tpu.core_type<tc>, window_params = [{transform_indices = @transform_0, window_bounds = array<i64: 16, 8>}, {transform_indices = @transform_1, window_bounds = array<i64: 6, 8>}]} {
    %c0 = arith.constant 0 : index
    %c0_0 = arith.constant 0 : index
    %0 = vector.load %arg1[%c0, %c0_0] : memref<16x8xf32, #tpu.memory_space<vmem>>, vector<16x8xf32>
    %1 = tpu.iota {dimensions = array<i32: 0>} : vector<16x1xi32>
    %cst = arith.constant dense<0xFF800000> : vector<8xf32>
    %2 = vector.multi_reduction <maximumf>, %0, %cst [0] : vector<16x8xf32> to vector<8xf32>
    %3 = vector.shape_cast %2 : vector<8xf32> to vector<1x8xf32>
    %c0_1 = arith.constant 0 : index
    %c0_2 = arith.constant 0 : index
    %4 = vector.load %arg2[%c0_1, %c0_2] : memref<6x8xf32, #tpu.memory_space<vmem>>, vector<1x8xf32>
    tpu.vector_store %arg2[%c0_1, %c0_2], %3 {strides = array<i32>} : memref<6x8xf32, #tpu.memory_space<vmem>>, vector<1x8xf32>,
    %c0_i32 = arith.constant 0 : i32
    %5 = vector.broadcast %c0_i32 : i32 to vector<16x1xi32>
    %6 = arith.cmpi sge, %1, %5 : vector<16x1xi32>
    %c8_i32 = arith.constant 8 : i32
    %7 = vector.broadcast %c8_i32 : i32 to vector<16x1xi32>
    %8 = arith.cmpi slt, %1, %7 : vector<16x1xi32>
    %9 = arith.andi %6, %8 : vector<16x1xi1>
    %cst_3 = arith.constant 0xFF800000 : f32
    %10 = vector.shape_cast %9 : vector<16x1xi1> to vector<16x1xi1>
    %11 = vector.broadcast %10 : vector<16x1xi1> to vector<16x8xi1>
    %12 = vector.broadcast %cst_3 : f32 to vector<16x8xf32>
    %13 = arith.select %11, %0, %12 : vector<16x8xi1>, vector<16x8xf32>
    %cst_4 = arith.constant dense<0xFF800000> : vector<8xf32>
    %14 = vector.multi_reduction <maximumf>, %13, %cst_4 [0] : vector<16x8xf32> to vector<8xf32>
    %15 = vector.shape_cast %14 : vector<8xf32> to vector<1x8xf32>
    %c1 = arith.constant 1 : index
    %c0_5 = arith.constant 0 : index
    %16 = vector.load %arg2[%c1, %c0_5] : memref<6x8xf32, #tpu.memory_space<vmem>>, vector<1x8xf32>
    tpu.vector_store %arg2[%c1, %c0_5], %15 {strides = array<i32>} : memref<6x8xf32, #tpu.memory_space<vmem>>, vector<1x8xf32>,
    %c8_i32_6 = arith.constant 8 : i32
    %17 = vector.broadcast %c8_i32_6 : i32 to vector<16x1xi32>
    %18 = arith.cmpi sge, %1, %17 : vector<16x1xi32>
    %c16_i32 = arith.constant 16 : i32
    %19 = vector.broadcast %c16_i32 : i32 to vector<16x1xi32>
    %20 = arith.cmpi slt, %1, %19 : vector<16x1xi32>
    %21 = arith.andi %18, %20 : vector<16x1xi1>
    %cst_7 = arith.constant 0xFF800000 : f32
    %22 = vector.shape_cast %21 : vector<16x1xi1> to vector<16x1xi1>
    %23 = vector.broadcast %22 : vector<16x1xi1> to vector<16x8xi1>
    %24 = vector.broadcast %cst_7 : f32 to vector<16x8xf32>
    %25 = arith.select %23, %0, %24 : vector<16x8xi1>, vector<16x8xf32>
    %cst_8 = arith.constant dense<0xFF800000> : vector<8xf32>
    %26 = vector.multi_reduction <maximumf>, %25, %cst_8 [0] : vector<16x8xf32> to vector<8xf32>
    %27 = vector.shape_cast %26 : vector<8xf32> to vector<1x8xf32>
    %c2 = arith.constant 2 : index
    %c0_9 = arith.constant 0 : index
    %28 = vector.load %arg2[%c2, %c0_9] : memref<6x8xf32, #tpu.memory_space<vmem>>, vector<1x8xf32>
    tpu.vector_store %arg2[%c2, %c0_9], %27 {strides = array<i32>} : memref<6x8xf32, #tpu.memory_space<vmem>>, vector<1x8xf32>,
    %c0_i32_10 = arith.constant 0 : i32
    %29 = vector.broadcast %c0_i32_10 : i32 to vector<16x1xi32>
    %30 = arith.cmpi sge, %1, %29 : vector<16x1xi32>
    %c5_i32 = arith.constant 5 : i32
    %31 = vector.broadcast %c5_i32 : i32 to vector<16x1xi32>
    %32 = arith.cmpi slt, %1, %31 : vector<16x1xi32>
    %33 = arith.andi %30, %32 : vector<16x1xi1>
    %cst_11 = arith.constant 0xFF800000 : f32
    %34 = vector.shape_cast %33 : vector<16x1xi1> to vector<16x1xi1>
    %35 = vector.broadcast %34 : vector<16x1xi1> to vector<16x8xi1>
    %36 = vector.broadcast %cst_11 : f32 to vector<16x8xf32>
    %37 = arith.select %35, %0, %36 : vector<16x8xi1>, vector<16x8xf32>
    %cst_12 = arith.constant dense<0xFF800000> : vector<8xf32>
    %38 = vector.multi_reduction <maximumf>, %37, %cst_12 [0] : vector<16x8xf32> to vector<8xf32>
    %39 = vector.shape_cast %38 : vector<8xf32> to vector<1x8xf32>
    %c3 = arith.constant 3 : index
    %c0_13 = arith.constant 0 : index
    %40 = vector.load %arg2[%c3, %c0_13] : memref<6x8xf32, #tpu.memory_space<vmem>>, vector<1x8xf32>
    tpu.vector_store %arg2[%c3, %c0_13], %39 {strides = array<i32>} : memref<6x8xf32, #tpu.memory_space<vmem>>, vector<1x8xf32>,
    %c5_i32_14 = arith.constant 5 : i32
    %41 = vector.broadcast %c5_i32_14 : i32 to vector<16x1xi32>
    %42 = arith.cmpi sge, %1, %41 : vector<16x1xi32>
    %c11_i32 = arith.constant 11 : i32
    %43 = vector.broadcast %c11_i32 : i32 to vector<16x1xi32>
    %44 = arith.cmpi slt, %1, %43 : vector<16x1xi32>
    %45 = arith.andi %42, %44 : vector<16x1xi1>
    %cst_15 = arith.constant 0xFF800000 : f32
    %46 = vector.shape_cast %45 : vector<16x1xi1> to vector<16x1xi1>
    %47 = vector.broadcast %46 : vector<16x1xi1> to vector<16x8xi1>
    %48 = vector.broadcast %cst_15 : f32 to vector<16x8xf32>
    %49 = arith.select %47, %0, %48 : vector<16x8xi1>, vector<16x8xf32>
    %cst_16 = arith.constant dense<0xFF800000> : vector<8xf32>
    %50 = vector.multi_reduction <maximumf>, %49, %cst_16 [0] : vector<16x8xf32> to vector<8xf32>
    %51 = vector.shape_cast %50 : vector<8xf32> to vector<1x8xf32>
    %c4 = arith.constant 4 : index
    %c0_17 = arith.constant 0 : index
    %52 = vector.load %arg2[%c4, %c0_17] : memref<6x8xf32, #tpu.memory_space<vmem>>, vector<1x8xf32>
    tpu.vector_store %arg2[%c4, %c0_17], %51 {strides = array<i32>} : memref<6x8xf32, #tpu.memory_space<vmem>>, vector<1x8xf32>,
    %c11_i32_18 = arith.constant 11 : i32
    %53 = vector.broadcast %c11_i32_18 : i32 to vector<16x1xi32>
    %54 = arith.cmpi sge, %1, %53 : vector<16x1xi32>
    %c16_i32_19 = arith.constant 16 : i32
    %55 = vector.broadcast %c16_i32_19 : i32 to vector<16x1xi32>
    %56 = arith.cmpi slt, %1, %55 : vector<16x1xi32>
    %57 = arith.andi %54, %56 : vector<16x1xi1>
    %cst_20 = arith.constant 0xFF800000 : f32
    %58 = vector.shape_cast %57 : vector<16x1xi1> to vector<16x1xi1>
    %59 = vector.broadcast %58 : vector<16x1xi1> to vector<16x8xi1>
    %60 = vector.broadcast %cst_20 : f32 to vector<16x8xf32>
    %61 = arith.select %59, %0, %60 : vector<16x8xi1>, vector<16x8xf32>
    %cst_21 = arith.constant dense<0xFF800000> : vector<8xf32>
    %62 = vector.multi_reduction <maximumf>, %61, %cst_21 [0] : vector<16x8xf32> to vector<8xf32>
    %63 = vector.shape_cast %62 : vector<8xf32> to vector<1x8xf32>
    %c5 = arith.constant 5 : index
    %c0_22 = arith.constant 0 : index
    %64 = vector.load %arg2[%c5, %c0_22] : memref<6x8xf32, #tpu.memory_space<vmem>>, vector<1x8xf32>
    tpu.vector_store %arg2[%c5, %c0_22], %63 {strides = array<i32>} : memref<6x8xf32, #tpu.memory_space<vmem>>, vector<1x8xf32>,
    return
  }
  func.func @transform_0(%arg0: i32) -> (i32, i32) {
    %c0_i32 = arith.constant 0 : i32
    %c0_i32_0 = arith.constant 0 : i32
    return %c0_i32, %arg0 : i32, i32
  }
  func.func @transform_1(%arg0: i32) -> (i32, i32) {
    %c0_i32 = arith.constant 0 : i32
    %c0_i32_0 = arith.constant 0 : i32
    return %c0_i32, %arg0 : i32, i32
  }
}

</mosaic_0001>

<llo_original>
// kernel: tpu_custom_call.1
$region0: #{tpu_custom_call.1}
  #allocation0 [shape = 'u32[]', space=smem, size = 0x4, offset = 0x4, fixed_abs, tag = 'smem constant byte address 0x4 - core index']
  #allocation1 [shape = 'u32[144,128]{1,0:T(1,128)}', space=vmem, size = 0x12000, scoped, tag = 'internal scratch']
  %s0 = inlined_call_operand.vmem [shape: f32[16,8], index: 0, kind: input, shape index: {}]
  %s1 = inlined_call_operand.hbm [shape: f32[6,8], index: 1, kind: output, shape index: {}]
  %s2 = sld [smem:[#allocation0]]
  $region14: #{tpu_custom_call.1} parent=0
    _
  %s4 = ssub.s32 1, %s2
  %s5 = scalar_select 0, %s4, %s2
  $region1: #{tpu_custom_call.1} parent=0
    #allocation2 [shape = 'u8[4096]{0}', space=vmem, size = 0x1000, scoped, tag = 'output window, operand 0, single buffered']
    #allocation3 [shape = 's32[1]{0}', space=sflag, size = 0x4, scoped, tag = 'scoped memory for tpu_custom_call.1']
    %6 = vsyncpa [#allocation3], 0
    // Predicated region
    $region2: #{tpu_custom_call.1} parent=1 // pred_check
      _
    $region3: #{tpu_custom_call.1} parent=1 // pred_check_branch
      %8 = sbr.rel (0) target = $region5
    $region4: #{tpu_custom_call.1} parent=1 // pred_region
      _
    $region5: #{tpu_custom_call.1} parent=1 // pred_fallthru
      _
    %v9 = vld [vmem:[%s0] sm:$0xff]
    %v10 = vld [vmem:[%s0 + $0x8] sm:$0xff]
    %v11 = vlaneseq
    %v12 = vshrl.u32 %v11, 7
    %v13 = vadd.s32 %v12, 8
    %vm14 = vcmask 64512
    %v15 = vsel %vm14, %v9, -inf
    %v16 = vsel %vm14, %v10, -inf
    %v17 = vmax.f32 %v15, %v16
    %v18 = vrot.slane %v17, 4
    %v19 = vmax.f32 %v17, %v18
    %v20 = vrot.slane %v19, 2
    %v21 = vmax.f32 %v19, %v20
    %v22 = vrot.slane %v21, 1
    %v23 = vmax.f32 %v21, %v22
    %vm24 = vcmask 57344
    %25 = vst.msk [vmem:[#allocation2] sm:$0x1] %vm24, %v23
    %vm26 = vcmp.ge.s32.totalorder %v12, 0
    %vm27 = vcmp.ge.s32.totalorder %v13, 0
    %vm28 = vcmp.lt.s32.totalorder %v12, 8
    %vm29 = vcmp.lt.s32.totalorder %v13, 8
    %vm30 = vmand %vm26, %vm28
    %vm31 = vmand %vm27, %vm29
    %v32 = vsel %vm30, 1, 0
    %v33 = vsel %vm31, 1, 0
    %vm34 = vcmp.eq.s32.totalorder %v32, 1
    %vm35 = vcmp.eq.s32.totalorder %v33, 1
    %v36 = vsel %vm34, %v9, -inf
    %v37 = vsel %vm35, %v10, -inf
    %v38 = vsel %vm14, %v36, -inf
    %v39 = vsel %vm14, %v37, -inf
    %v40 = vmax.f32 %v38, %v39
    %v41 = vrot.slane %v40, 4
    %v42 = vmax.f32 %v40, %v41
    %v43 = vrot.slane %v42, 2
    %v44 = vmax.f32 %v42, %v43
    %v45 = vrot.slane %v44, 1
    %v46 = vmax.f32 %v44, %v45
    %47 = vst.msk [vmem:[#allocation2 + $0x1] sm:$0x1] %vm24, %v46
    %vm48 = vcmp.ge.s32.totalorder %v12, 8
    %vm49 = vcmp.ge.s32.totalorder %v13, 8
    %vm50 = vcmp.lt.s32.totalorder %v12, 16
    %vm51 = vcmp.lt.s32.totalorder %v13, 16
    %vm52 = vmand %vm48, %vm50
    %vm53 = vmand %vm49, %vm51
    %v54 = vsel %vm52, 1, 0
    %v55 = vsel %vm53, 1, 0
    %vm56 = vcmp.eq.s32.totalorder %v54, 1
    %vm57 = vcmp.eq.s32.totalorder %v55, 1
    %v58 = vsel %vm56, %v9, -inf
    %v59 = vsel %vm57, %v10, -inf
    %v60 = vsel %vm14, %v58, -inf
    %v61 = vsel %vm14, %v59, -inf
    %v62 = vmax.f32 %v60, %v61
    %v63 = vrot.slane %v62, 4
    %v64 = vmax.f32 %v62, %v63
    %v65 = vrot.slane %v64, 2
    %v66 = vmax.f32 %v64, %v65
    %v67 = vrot.slane %v66, 1
    %v68 = vmax.f32 %v66, %v67
    %69 = vst.msk [vmem:[#allocation2 + $0x2] sm:$0x1] %vm24, %v68
    %vm70 = vcmp.lt.s32.totalorder %v12, 5
    %vm71 = vcmp.lt.s32.totalorder %v13, 5
    %vm72 = vmand %vm26, %vm70
    %vm73 = vmand %vm27, %vm71
    %v74 = vsel %vm72, 1, 0
    %v75 = vsel %vm73, 1, 0
    %vm76 = vcmp.eq.s32.totalorder %v74, 1
    %vm77 = vcmp.eq.s32.totalorder %v75, 1
    %v78 = vsel %vm76, %v9, -inf
    %v79 = vsel %vm77, %v10, -inf
    %v80 = vsel %vm14, %v78, -inf
    %v81 = vsel %vm14, %v79, -inf
    %v82 = vmax.f32 %v80, %v81
    %v83 = vrot.slane %v82, 4
    %v84 = vmax.f32 %v82, %v83
    %v85 = vrot.slane %v84, 2
    %v86 = vmax.f32 %v84, %v85
    %v87 = vrot.slane %v86, 1
    %v88 = vmax.f32 %v86, %v87
    %89 = vst.msk [vmem:[#allocation2 + $0x3] sm:$0x1] %vm24, %v88
    %vm90 = vcmp.ge.s32.totalorder %v12, 5
    %vm91 = vcmp.ge.s32.totalorder %v13, 5
    %vm92 = vcmp.lt.s32.totalorder %v12, 11
    %vm93 = vcmp.lt.s32.totalorder %v13, 11
    %vm94 = vmand %vm90, %vm92
    %vm95 = vmand %vm91, %vm93
    %v96 = vsel %vm94, 1, 0
    %v97 = vsel %vm95, 1, 0
    %vm98 = vcmp.eq.s32.totalorder %v96, 1
    %vm99 = vcmp.eq.s32.totalorder %v97, 1
    %v100 = vsel %vm98, %v9, -inf
    %v101 = vsel %vm99, %v10, -inf
    %v102 = vsel %vm14, %v100, -inf
    %v103 = vsel %vm14, %v101, -inf
    %v104 = vmax.f32 %v102, %v103
    %v105 = vrot.slane %v104, 4
    %v106 = vmax.f32 %v104, %v105
    %v107 = vrot.slane %v106, 2
    %v108 = vmax.f32 %v106, %v107
    %v109 = vrot.slane %v108, 1
    %v110 = vmax.f32 %v108, %v109
    %111 = vst.msk [vmem:[#allocation2 + $0x4] sm:$0x1] %vm24, %v110
    %vm112 = vcmp.ge.s32.totalorder %v12, 11
    %vm113 = vcmp.ge.s32.totalorder %v13, 11
    %vm114 = vmand %vm112, %vm50
    %vm115 = vmand %vm113, %vm51
    %v116 = vsel %vm114, 1, 0
    %v117 = vsel %vm115, 1, 0
    %vm118 = vcmp.eq.s32.totalorder %v116, 1
    %vm119 = vcmp.eq.s32.totalorder %v117, 1
    %v120 = vsel %vm118, %v9, -inf
    %v121 = vsel %vm119, %v10, -inf
    %v122 = vsel %vm14, %v120, -inf
    %v123 = vsel %vm14, %v121, -inf
    %v124 = vmax.f32 %v122, %v123
    %v125 = vrot.slane %v124, 4
    %v126 = vmax.f32 %v124, %v125
    %v127 = vrot.slane %v126, 2
    %v128 = vmax.f32 %v126, %v127
    %v129 = vrot.slane %v128, 1
    %v130 = vmax.f32 %v128, %v129
    %131 = vst.msk [vmem:[#allocation2 + $0x5] sm:$0x1] %vm24, %v130
    // Predicated region
    $region6: #{tpu_custom_call.1} parent=1 // pred_check
      _
    $region7: #{tpu_custom_call.1} parent=1 // pred_check_branch
      %133 = sbr.rel (0) target = $region9
    $region8: #{tpu_custom_call.1} parent=1 // pred_region
      %s135 = ssub.s32 128, 128
      %136 = vsyncadd [#allocation3], %s135
      %s138 = sshll.u32 [#allocation2], 4
      %s139 = int_to_ptr.vmem [resolvable:$true] %s138
      %141 = dma.vmem_to_hbm [thread:$0]  %s139, 128, %s1, [#allocation3]
    $region9: #{tpu_custom_call.1} parent=1 // pred_fallthru
      _
    // Predicated region
    $region10: #{tpu_custom_call.1} parent=1 // pred_check
      _
    $region11: #{tpu_custom_call.1} parent=1 // pred_check_branch
      %143 = sbr.rel (0) target = $region13
    $region12: #{tpu_custom_call.1} parent=1 // pred_region
      %144 = dma.done [#allocation3], 128
    $region13: #{tpu_custom_call.1} parent=1 // pred_fallthru
      _
    %145 = vsyncpa [#allocation3], 1

</llo_original>
